<compile_context>
chip_gen: v5e
topology: v5e:2x2
jax: 0.10.0
libtpu: 0.0.40
codegen_flags: <defaults>
</compile_context>

<pallas_src>
import functools

import jax
import jax.numpy as jnp
from jax.experimental import pallas as pl
from jax.experimental.pallas import tpu as pltpu


# ------------------------------- fused kernel -------------------------------

def _make_block_kernel(*, H, W, Wp, Lp, planes, cout, stride, shortcut):
    """Build the fused inverted-residual kernel.

    shortcut: None (stride != 1), "identity", or "conv".
    Layout: x_ref block is (1, Cin, Lp) where Lp = (H+3)*(W+2) is the
    zero-padded (top 1 / bottom 2 / sides 1) spatial extent, flattened.
    """
    HWp = H * Wp                       # stride-1 flat output length (incl. 2
    Ho = (H - 1) // stride + 1         # scratch columns per row, trimmed in
    Wo = (W - 1) // stride + 1         # the wrapper)

    def kernel(*refs):
        if shortcut == "conv":
            (x_ref, mask_ref, w1_ref, s1_ref, b1_ref, w2_ref, s2_ref, b2_ref,
             w3_ref, s3_ref, b3_ref, wsc_ref, ssc_ref, bsc_ref, o_ref,
             *scratch) = refs
        else:
            (x_ref, mask_ref, w1_ref, s1_ref, b1_ref, w2_ref, s2_ref, b2_ref,
             w3_ref, s3_ref, b3_ref, o_ref, *scratch) = refs

        x = x_ref[0]                                        # (Cin, Lp) f32
        w2 = w2_ref[...]                                    # (planes, 9) f32

        # ---- conv1 (1x1 expand) + bn1 + ReLU on the padded flat grid ----
        e = jnp.dot(w1_ref[...], x.astype(jnp.bfloat16),
                    preferred_element_type=jnp.float32)     # (planes, Lp)
        e = jnp.maximum(e * s1_ref[...] + b1_ref[...], 0.0)
        # conv2's zero padding must see zeros (not the BN bias): mask pads.
        e = e * mask_ref[...]

        # ---- conv2 (3x3 depthwise, stride s) + bn2 + ReLU ----
        if stride == 1:
            acc = jnp.zeros((planes, HWp), jnp.float32)
            for kh in range(3):
                for kw in range(3):
                    off = kh * Wp + kw
                    # statically shifted window of the flat padded grid
                    acc = acc + e[:, off:off + HWp] * w2[:, kh * 3 + kw:
                                                         kh * 3 + kw + 1]
            h2 = jnp.maximum(acc * s2_ref[...] + b2_ref[...], 0.0)
        else:
            # in-kernel stride: only the needed outputs are computed, via
            # strided reads from a VMEM scratch holding the expanded map.
            e_sc = scratch[0]
            e_sc[...] = e
            rows = []
            for ho in range(Ho):
                acc = jnp.zeros((planes, Wo), jnp.float32)
                for kh in range(3):
                    base = (stride * ho + kh) * Wp
                    for kw in range(3):
                        tap = e_sc[:, pl.ds(base + kw, Wo, stride=stride)]
                        acc = acc + tap * w2[:, kh * 3 + kw: kh * 3 + kw + 1]
                rows.append(acc)
            h2 = jnp.concatenate(rows, axis=1)              # (planes, Ho*Wo)
            h2 = jnp.maximum(h2 * s2_ref[...] + b2_ref[...], 0.0)

        # ---- conv3 (1x1 project) + bn3 (no ReLU yet: linear bottleneck) ----
        y = jnp.dot(w3_ref[...], h2.astype(jnp.bfloat16),
                    preferred_element_type=jnp.float32)     # (cout, Lout)
        y = y * s3_ref[...] + b3_ref[...]

        # ---- residual (stride == 1 only), then the final ReLU ----
        if shortcut is not None:
            # window of x aligned with y's flat (h*Wp + w) grid
            xwin = x[:, Wp + 1: Wp + 1 + HWp]
            if shortcut == "conv":
                sc = jnp.dot(wsc_ref[...], xwin.astype(jnp.bfloat16),
                             preferred_element_type=jnp.float32)
                sc = sc * ssc_ref[...] + bsc_ref[...]
            else:                                           # identity
                sc = xwin
            y = y + sc
        o_ref[0] = jnp.maximum(y, 0.0).astype(o_ref.dtype)

    return kernel


# ------------------------------ block assembly ------------------------------

def _fold_bn(gamma, beta, mean, var, eps=1e-5):
    scale = gamma / jnp.sqrt(var + eps)
    return scale, beta - mean * scale


def init_block_params(key, in_planes, out_planes, expansion):
    planes = in_planes * expansion
    keys = jax.random.split(key, 8)

    def bn(k, c):
        k1, k2, k3, k4 = jax.random.split(k, 4)
        gamma = 1.0 + 0.1 * jax.random.normal(k1, (c,), jnp.float32)
        beta = 0.1 * jax.random.normal(k2, (c,), jnp.float32)
        mean = 0.1 * jax.random.normal(k3, (c,), jnp.float32)
        var = jnp.abs(jax.random.normal(k4, (c,), jnp.float32)) + 0.5
        return _fold_bn(gamma, beta, mean, var)

    params = {
        "w1": 0.1 * jax.random.normal(keys[0], (in_planes, planes), jnp.float32),
        "bn1": bn(keys[1], planes),
        "w2": 0.1 * jax.random.normal(keys[2], (3, 3, planes), jnp.float32),
        "bn2": bn(keys[3], planes),
        "w3": 0.1 * jax.random.normal(keys[4], (planes, out_planes), jnp.float32),
        "bn3": bn(keys[5], out_planes),
    }
    if in_planes != out_planes:  # shortcut conv (only used when stride == 1)
        params["ws"] = 0.1 * jax.random.normal(
            keys[6], (in_planes, out_planes), jnp.float32)
        params["bns"] = bn(keys[7], out_planes)
    return params


def block_forward(x_nchw, params, *, stride):
    n, cin, h, w = x_nchw.shape
    planes = params["w1"].shape[1]
    cout = params["w3"].shape[1]

    wp = w + 2
    lp = (h + 3) * wp          # pad: top 1, bottom 2 (flat-window slack), sides 1
    hwp = h * wp
    ho = (h - 1) // stride + 1
    wo = (w - 1) // stride + 1
    lout = hwp if stride == 1 else ho * wo

    # Keep NCHW (channels-first) end to end: pad spatial dims once and flatten
    # them into a single lane-dense trailing dim.  (Reshape is a free view.)
    xp = jnp.pad(x_nchw, ((0, 0), (0, 0), (1, 2), (1, 1))).reshape(n, cin, lp)
    mask = jnp.pad(jnp.ones((h, w), jnp.float32), ((1, 2), (1, 1))).reshape(1, lp)

    s1, b1 = params["bn1"]
    s2, b2 = params["bn2"]
    s3, b3 = params["bn3"]
    col = lambda v: v.reshape(-1, 1).astype(jnp.float32)

    w1t = params["w1"].T.astype(jnp.bfloat16)                    # (planes, cin)
    w2f = params["w2"].reshape(9, planes).T.astype(jnp.float32)  # (planes, 9)
    w3t = params["w3"].T.astype(jnp.bfloat16)                    # (cout, planes)

    if stride == 1:
        shortcut = "conv" if "ws" in params else "identity"
    else:
        shortcut = None

    def const_spec(arr):
        nd = arr.ndim
        return pl.BlockSpec(arr.shape, lambda b, _nd=nd: (0,) * _nd)

    args = [xp, mask, w1t, col(s1), col(b1), w2f, col(s2), col(b2),
            w3t, col(s3), col(b3)]
    in_specs = [pl.BlockSpec((1, cin, lp), lambda b: (b, 0, 0))]
    in_specs += [const_spec(a) for a in args[1:]]
    if shortcut == "conv":
        ssc, bsc = params["bns"]
        sc_args = [params["ws"].T.astype(jnp.bfloat16), col(ssc), col(bsc)]
        args += sc_args
        in_specs += [const_spec(a) for a in sc_args]

    scratch = []
    if stride != 1:
        scratch = [pltpu.VMEM((planes, lp), jnp.float32)]

    kernel = _make_block_kernel(H=h, W=w, Wp=wp, Lp=lp, planes=planes,
                                cout=cout, stride=stride, shortcut=shortcut)

    out_flat = pl.pallas_call(
        kernel,
        out_shape=jax.ShapeDtypeStruct((n, cout, lout), x_nchw.dtype),
        grid=(n,),
        in_specs=in_specs,
        out_specs=pl.BlockSpec((1, cout, lout), lambda b: (b, 0, 0)),
        scratch_shapes=scratch,
        compiler_params=pltpu.CompilerParams(
            dimension_semantics=("parallel",),
            vmem_limit_bytes=32 * 1024 * 1024),
    )(*args)

    if stride == 1:
        # drop the 2 padded-width scratch columns per row -> NCHW output
        out = out_flat.reshape(n, cout, h, wp)[:, :, :, :w]
    else:
        out = out_flat.reshape(n, cout, ho, wo)
    return out


# ------------------------- pure-JAX reference (test) ------------------------

def _reference_block(x, params, *, stride):
    s1, b1 = params["bn1"]
    s2, b2 = params["bn2"]
    s3, b3 = params["bn3"]
    cin = x.shape[1]
    planes = params["w1"].shape[1]
    cout = params["w3"].shape[1]
    dn = ("NCHW", "OIHW", "NCHW")

    def bn(y, s, b):
        return y * s[None, :, None, None] + b[None, :, None, None]

    y = jax.lax.conv_general_dilated(
        x, params["w1"].T.reshape(planes, cin, 1, 1), (1, 1), "VALID",
        dimension_numbers=dn)
    y = jax.nn.relu(bn(y, s1, b1))
    wdw = jnp.transpose(params["w2"], (2, 0, 1)).reshape(planes, 1, 3, 3)
    y = jax.lax.conv_general_dilated(
        y, wdw, (stride, stride), ((1, 1), (1, 1)),
        dimension_numbers=dn, feature_group_count=planes)
    y = jax.nn.relu(bn(y, s2, b2))
    y = jax.lax.conv_general_dilated(
        y, params["w3"].T.reshape(cout, planes, 1, 1), (1, 1), "VALID",
        dimension_numbers=dn)
    y = bn(y, s3, b3)
    if stride == 1:
        if "ws" in params:
            ssc, bsc = params["bns"]
            sc = jax.lax.conv_general_dilated(
                x, params["ws"].T.reshape(cout, cin, 1, 1), (1, 1), "VALID",
                dimension_numbers=dn)
            sc = bn(sc, ssc, bsc)
        else:
            sc = x
        y = y + sc
    return jax.nn.relu(y)


if __name__ == "__main__":
    in_planes, out_planes, expansion, stride = 4, 8, 2, 1

    key = jax.random.PRNGKey(0)
    kx, kp = jax.random.split(key)
    x = jax.random.normal(kx, (2, in_planes, 16, 16), jnp.float32)
    params = init_block_params(kp, in_planes, out_planes, expansion)

    fwd = jax.jit(functools.partial(block_forward, stride=stride))
    out = fwd(x, params)
    jax.block_until_ready(out)
    assert out.shape == (2, out_planes, 16, 16)

    # correctness check vs a pure-JAX reference (bf16 matmul operands -> loose tol)
    ref = _reference_block(x, params, stride=stride)
    assert jnp.allclose(out, ref, atol=3e-2, rtol=3e-2), float(
        jnp.max(jnp.abs(out - ref)))
    print("KERNEL_OK")
</pallas_src>

<mosaic_0001>
module attributes {stable_mosaic.version = 11 : i64} {
  func.func @kernel(%arg0: i32, %arg1: memref<1x4x342xf32, #tpu.memory_space<vmem>>, %arg2: memref<1x342xf32, #tpu.memory_space<vmem>>, %arg3: memref<8x4xbf16, #tpu.memory_space<vmem>>, %arg4: memref<8x1xf32, #tpu.memory_space<vmem>>, %arg5: memref<8x1xf32, #tpu.memory_space<vmem>>, %arg6: memref<8x9xf32, #tpu.memory_space<vmem>>, %arg7: memref<8x1xf32, #tpu.memory_space<vmem>>, %arg8: memref<8x1xf32, #tpu.memory_space<vmem>>, %arg9: memref<8x8xbf16, #tpu.memory_space<vmem>>, %arg10: memref<8x1xf32, #tpu.memory_space<vmem>>, %arg11: memref<8x1xf32, #tpu.memory_space<vmem>>, %arg12: memref<8x4xbf16, #tpu.memory_space<vmem>>, %arg13: memref<8x1xf32, #tpu.memory_space<vmem>>, %arg14: memref<8x1xf32, #tpu.memory_space<vmem>>, %arg15: memref<1x8x288xf32, #tpu.memory_space<vmem>>) attributes {dimension_semantics = [#tpu.dimension_semantics<parallel>], iteration_bounds = array<i64: 2>, scalar_prefetch = 0 : i64, scratch_operands = 0 : i64, tpu.core_type = #tpu.core_type<tc>, window_params = [{transform_indices = @transform_0, window_bounds = array<i64: 1, 4, 342>}, {pipeline_mode = #tpu.pipeline_mode<synchronous>, transform_indices = @transform_1, window_bounds = array<i64: 1, 342>}, {pipeline_mode = #tpu.pipeline_mode<synchronous>, transform_indices = @transform_2, window_bounds = array<i64: 8, 4>}, {pipeline_mode = #tpu.pipeline_mode<synchronous>, transform_indices = @transform_3, window_bounds = array<i64: 8, 1>}, {pipeline_mode = #tpu.pipeline_mode<synchronous>, transform_indices = @transform_4, window_bounds = array<i64: 8, 1>}, {pipeline_mode = #tpu.pipeline_mode<synchronous>, transform_indices = @transform_5, window_bounds = array<i64: 8, 9>}, {pipeline_mode = #tpu.pipeline_mode<synchronous>, transform_indices = @transform_6, window_bounds = array<i64: 8, 1>}, {pipeline_mode = #tpu.pipeline_mode<synchronous>, transform_indices = @transform_7, window_bounds = array<i64: 8, 1>}, {pipeline_mode = #tpu.pipeline_mode<synchronous>, transform_indices = @transform_8, window_bounds = array<i64: 8, 8>}, {pipeline_mode = #tpu.pipeline_mode<synchronous>, transform_indices = @transform_9, window_bounds = array<i64: 8, 1>}, {pipeline_mode = #tpu.pipeline_mode<synchronous>, transform_indices = @transform_10, window_bounds = array<i64: 8, 1>}, {pipeline_mode = #tpu.pipeline_mode<synchronous>, transform_indices = @transform_11, window_bounds = array<i64: 8, 4>}, {pipeline_mode = #tpu.pipeline_mode<synchronous>, transform_indices = @transform_12, window_bounds = array<i64: 8, 1>}, {pipeline_mode = #tpu.pipeline_mode<synchronous>, transform_indices = @transform_13, window_bounds = array<i64: 8, 1>}, {transform_indices = @transform_14, window_bounds = array<i64: 1, 8, 288>}]} {
    %c0 = arith.constant 0 : index
    %c0_0 = arith.constant 0 : index
    %c0_1 = arith.constant 0 : index
    %0 = vector.load %arg1[%c0, %c0_0, %c0_1] : memref<1x4x342xf32, #tpu.memory_space<vmem>>, vector<1x4x342xf32>
    %1 = vector.shape_cast %0 : vector<1x4x342xf32> to vector<4x342xf32>
    %c0_2 = arith.constant 0 : index
    %c0_3 = arith.constant 0 : index
    %2 = vector.load %arg6[%c0_2, %c0_3] : memref<8x9xf32, #tpu.memory_space<vmem>>, vector<8x9xf32>
    %c0_4 = arith.constant 0 : index
    %c0_5 = arith.constant 0 : index
    %3 = vector.load %arg3[%c0_4, %c0_5] : memref<8x4xbf16, #tpu.memory_space<vmem>>, vector<8x4xbf16>
    %4 = arith.truncf %1 : vector<4x342xf32> to vector<4x342xbf16>
    %cst = arith.constant dense<0.000000e+00> : vector<8x342xf32>
    %5 = tpu.matmul %3, %4, %cst {dimension_numbers = #tpu.dot_dimension_numbers<[1], [0], [0], [1], [0, 0, 1, 1], [], []>} : vector<8x4xbf16>, vector<4x342xbf16>, vector<8x342xf32> -> vector<8x342xf32>
    %c0_6 = arith.constant 0 : index
    %c0_7 = arith.constant 0 : index
    %6 = vector.load %arg4[%c0_6, %c0_7] : memref<8x1xf32, #tpu.memory_space<vmem>>, vector<8x1xf32>
    %7 = vector.broadcast %6 : vector<8x1xf32> to vector<8x342xf32>
    %8 = arith.mulf %5, %7 : vector<8x342xf32>
    %c0_8 = arith.constant 0 : index
    %c0_9 = arith.constant 0 : index
    %9 = vector.load %arg5[%c0_8, %c0_9] : memref<8x1xf32, #tpu.memory_space<vmem>>, vector<8x1xf32>
    %10 = vector.broadcast %9 : vector<8x1xf32> to vector<8x342xf32>
    %11 = arith.addf %8, %10 : vector<8x342xf32>
    %cst_10 = arith.constant 0.000000e+00 : f32
    %12 = vector.broadcast %cst_10 : f32 to vector<8x342xf32>
    %13 = arith.maximumf %11, %12 : vector<8x342xf32>
    %c0_11 = arith.constant 0 : index
    %c0_12 = arith.constant 0 : index
    %14 = vector.load %arg2[%c0_11, %c0_12] : memref<1x342xf32, #tpu.memory_space<vmem>>, vector<1x342xf32>
    %15 = vector.broadcast %14 : vector<1x342xf32> to vector<8x342xf32>
    %16 = arith.mulf %13, %15 : vector<8x342xf32>
    %cst_13 = arith.constant 0.000000e+00 : f32
    %17 = vector.broadcast %cst_13 : f32 to vector<8x288xf32>
    %18 = vector.extract_strided_slice %16 {offsets = [0, 0], sizes = [8, 288], strides = [1, 1]} : vector<8x342xf32> to vector<8x288xf32>
    %19 = vector.extract_strided_slice %2 {offsets = [0, 0], sizes = [8, 1], strides = [1, 1]} : vector<8x9xf32> to vector<8x1xf32>
    %20 = vector.broadcast %19 : vector<8x1xf32> to vector<8x288xf32>
    %21 = arith.mulf %18, %20 : vector<8x288xf32>
    %22 = arith.addf %17, %21 : vector<8x288xf32>
    %23 = vector.extract_strided_slice %16 {offsets = [0, 1], sizes = [8, 288], strides = [1, 1]} : vector<8x342xf32> to vector<8x288xf32>
    %24 = vector.extract_strided_slice %2 {offsets = [0, 1], sizes = [8, 1], strides = [1, 1]} : vector<8x9xf32> to vector<8x1xf32>
    %25 = vector.broadcast %24 : vector<8x1xf32> to vector<8x288xf32>
    %26 = arith.mulf %23, %25 : vector<8x288xf32>
    %27 = arith.addf %22, %26 : vector<8x288xf32>
    %28 = vector.extract_strided_slice %16 {offsets = [0, 2], sizes = [8, 288], strides = [1, 1]} : vector<8x342xf32> to vector<8x288xf32>
    %29 = vector.extract_strided_slice %2 {offsets = [0, 2], sizes = [8, 1], strides = [1, 1]} : vector<8x9xf32> to vector<8x1xf32>
    %30 = vector.broadcast %29 : vector<8x1xf32> to vector<8x288xf32>
    %31 = arith.mulf %28, %30 : vector<8x288xf32>
    %32 = arith.addf %27, %31 : vector<8x288xf32>
    %33 = vector.extract_strided_slice %16 {offsets = [0, 18], sizes = [8, 288], strides = [1, 1]} : vector<8x342xf32> to vector<8x288xf32>
    %34 = vector.extract_strided_slice %2 {offsets = [0, 3], sizes = [8, 1], strides = [1, 1]} : vector<8x9xf32> to vector<8x1xf32>
    %35 = vector.broadcast %34 : vector<8x1xf32> to vector<8x288xf32>
    %36 = arith.mulf %33, %35 : vector<8x288xf32>
    %37 = arith.addf %32, %36 : vector<8x288xf32>
    %38 = vector.extract_strided_slice %16 {offsets = [0, 19], sizes = [8, 288], strides = [1, 1]} : vector<8x342xf32> to vector<8x288xf32>
    %39 = vector.extract_strided_slice %2 {offsets = [0, 4], sizes = [8, 1], strides = [1, 1]} : vector<8x9xf32> to vector<8x1xf32>
    %40 = vector.broadcast %39 : vector<8x1xf32> to vector<8x288xf32>
    %41 = arith.mulf %38, %40 : vector<8x288xf32>
    %42 = arith.addf %37, %41 : vector<8x288xf32>
    %43 = vector.extract_strided_slice %16 {offsets = [0, 20], sizes = [8, 288], strides = [1, 1]} : vector<8x342xf32> to vector<8x288xf32>
    %44 = vector.extract_strided_slice %2 {offsets = [0, 5], sizes = [8, 1], strides = [1, 1]} : vector<8x9xf32> to vector<8x1xf32>
    %45 = vector.broadcast %44 : vector<8x1xf32> to vector<8x288xf32>
    %46 = arith.mulf %43, %45 : vector<8x288xf32>
    %47 = arith.addf %42, %46 : vector<8x288xf32>
    %48 = vector.extract_strided_slice %16 {offsets = [0, 36], sizes = [8, 288], strides = [1, 1]} : vector<8x342xf32> to vector<8x288xf32>
    %49 = vector.extract_strided_slice %2 {offsets = [0, 6], sizes = [8, 1], strides = [1, 1]} : vector<8x9xf32> to vector<8x1xf32>
    %50 = vector.broadcast %49 : vector<8x1xf32> to vector<8x288xf32>
    %51 = arith.mulf %48, %50 : vector<8x288xf32>
    %52 = arith.addf %47, %51 : vector<8x288xf32>
    %53 = vector.extract_strided_slice %16 {offsets = [0, 37], sizes = [8, 288], strides = [1, 1]} : vector<8x342xf32> to vector<8x288xf32>
    %54 = vector.extract_strided_slice %2 {offsets = [0, 7], sizes = [8, 1], strides = [1, 1]} : vector<8x9xf32> to vector<8x1xf32>
    %55 = vector.broadcast %54 : vector<8x1xf32> to vector<8x288xf32>
    %56 = arith.mulf %53, %55 : vector<8x288xf32>
    %57 = arith.addf %52, %56 : vector<8x288xf32>
    %58 = vector.extract_strided_slice %16 {offsets = [0, 38], sizes = [8, 288], strides = [1, 1]} : vector<8x342xf32> to vector<8x288xf32>
    %59 = vector.extract_strided_slice %2 {offsets = [0, 8], sizes = [8, 1], strides = [1, 1]} : vector<8x9xf32> to vector<8x1xf32>
    %60 = vector.broadcast %59 : vector<8x1xf32> to vector<8x288xf32>
    %61 = arith.mulf %58, %60 : vector<8x288xf32>
    %62 = arith.addf %57, %61 : vector<8x288xf32>
    %c0_14 = arith.constant 0 : index
    %c0_15 = arith.constant 0 : index
    %63 = vector.load %arg7[%c0_14, %c0_15] : memref<8x1xf32, #tpu.memory_space<vmem>>, vector<8x1xf32>
    %64 = vector.broadcast %63 : vector<8x1xf32> to vector<8x288xf32>
    %65 = arith.mulf %62, %64 : vector<8x288xf32>
    %c0_16 = arith.constant 0 : index
    %c0_17 = arith.constant 0 : index
    %66 = vector.load %arg8[%c0_16, %c0_17] : memref<8x1xf32, #tpu.memory_space<vmem>>, vector<8x1xf32>
    %67 = vector.broadcast %66 : vector<8x1xf32> to vector<8x288xf32>
    %68 = arith.addf %65, %67 : vector<8x288xf32>
    %cst_18 = arith.constant 0.000000e+00 : f32
    %69 = vector.broadcast %cst_18 : f32 to vector<8x288xf32>
    %70 = arith.maximumf %68, %69 : vector<8x288xf32>
    %c0_19 = arith.constant 0 : index
    %c0_20 = arith.constant 0 : index
    %71 = vector.load %arg9[%c0_19, %c0_20] : memref<8x8xbf16, #tpu.memory_space<vmem>>, vector<8x8xbf16>
    %72 = arith.truncf %70 : vector<8x288xf32> to vector<8x288xbf16>
    %cst_21 = arith.constant dense<0.000000e+00> : vector<8x288xf32>
    %73 = tpu.matmul %71, %72, %cst_21 {dimension_numbers = #tpu.dot_dimension_numbers<[1], [0], [0], [1], [0, 0, 1, 1], [], []>} : vector<8x8xbf16>, vector<8x288xbf16>, vector<8x288xf32> -> vector<8x288xf32>
    %c0_22 = arith.constant 0 : index
    %c0_23 = arith.constant 0 : index
    %74 = vector.load %arg10[%c0_22, %c0_23] : memref<8x1xf32, #tpu.memory_space<vmem>>, vector<8x1xf32>
    %75 = vector.broadcast %74 : vector<8x1xf32> to vector<8x288xf32>
    %76 = arith.mulf %73, %75 : vector<8x288xf32>
    %c0_24 = arith.constant 0 : index
    %c0_25 = arith.constant 0 : index
    %77 = vector.load %arg11[%c0_24, %c0_25] : memref<8x1xf32, #tpu.memory_space<vmem>>, vector<8x1xf32>
    %78 = vector.broadcast %77 : vector<8x1xf32> to vector<8x288xf32>
    %79 = arith.addf %76, %78 : vector<8x288xf32>
    %80 = vector.extract_strided_slice %1 {offsets = [0, 19], sizes = [4, 288], strides = [1, 1]} : vector<4x342xf32> to vector<4x288xf32>
    %c0_26 = arith.constant 0 : index
    %c0_27 = arith.constant 0 : index
    %81 = vector.load %arg12[%c0_26, %c0_27] : memref<8x4xbf16, #tpu.memory_space<vmem>>, vector<8x4xbf16>
    %82 = arith.truncf %80 : vector<4x288xf32> to vector<4x288xbf16>
    %cst_28 = arith.constant dense<0.000000e+00> : vector<8x288xf32>
    %83 = tpu.matmul %81, %82, %cst_28 {dimension_numbers = #tpu.dot_dimension_numbers<[1], [0], [0], [1], [0, 0, 1, 1], [], []>} : vector<8x4xbf16>, vector<4x288xbf16>, vector<8x288xf32> -> vector<8x288xf32>
    %c0_29 = arith.constant 0 : index
    %c0_30 = arith.constant 0 : index
    %84 = vector.load %arg13[%c0_29, %c0_30] : memref<8x1xf32, #tpu.memory_space<vmem>>, vector<8x1xf32>
    %85 = vector.broadcast %84 : vector<8x1xf32> to vector<8x288xf32>
    %86 = arith.mulf %83, %85 : vector<8x288xf32>
    %c0_31 = arith.constant 0 : index
    %c0_32 = arith.constant 0 : index
    %87 = vector.load %arg14[%c0_31, %c0_32] : memref<8x1xf32, #tpu.memory_space<vmem>>, vector<8x1xf32>
    %88 = vector.broadcast %87 : vector<8x1xf32> to vector<8x288xf32>
    %89 = arith.addf %86, %88 : vector<8x288xf32>
    %90 = arith.addf %79, %89 : vector<8x288xf32>
    %cst_33 = arith.constant 0.000000e+00 : f32
    %91 = vector.broadcast %cst_33 : f32 to vector<8x288xf32>
    %92 = arith.maximumf %90, %91 : vector<8x288xf32>
    %c0_34 = arith.constant 0 : index
    %c0_35 = arith.constant 0 : index
    %c0_36 = arith.constant 0 : index
    %93 = vector.load %arg15[%c0_34, %c0_35, %c0_36] : memref<1x8x288xf32, #tpu.memory_space<vmem>>, vector<1x8x288xf32>
    %94 = vector.shape_cast %93 : vector<1x8x288xf32> to vector<8x288xf32>
    %95 = vector.shape_cast %92 : vector<8x288xf32> to vector<1x8x288xf32>
    tpu.vector_store %arg15[%c0_34, %c0_35, %c0_36], %95 {strides = array<i32>} : memref<1x8x288xf32, #tpu.memory_space<vmem>>, vector<1x8x288xf32>,
    return
  }
  func.func @transform_0(%arg0: i32) -> (i32, i32, i32) {
    %c0_i32 = arith.constant 0 : i32
    %c0_i32_0 = arith.constant 0 : i32
    %c0_i32_1 = arith.constant 0 : i32
    return %arg0, %c0_i32, %c0_i32_0 : i32, i32, i32
  }
  func.func @transform_1(%arg0: i32) -> (i32, i32) {
    %c0_i32 = arith.constant 0 : i32
    %c0_i32_0 = arith.constant 0 : i32
    %c0_i32_1 = arith.constant 0 : i32
    return %c0_i32, %c0_i32_0 : i32, i32
  }
  func.func @transform_2(%arg0: i32) -> (i32, i32) {
    %c0_i32 = arith.constant 0 : i32
    %c0_i32_0 = arith.constant 0 : i32
    %c0_i32_1 = arith.constant 0 : i32
    return %c0_i32, %c0_i32_0 : i32, i32
  }
  func.func @transform_3(%arg0: i32) -> (i32, i32) {
    %c0_i32 = arith.constant 0 : i32
    %c0_i32_0 = arith.constant 0 : i32
    %c0_i32_1 = arith.constant 0 : i32
    return %c0_i32, %c0_i32_0 : i32, i32
  }
  func.func @transform_4(%arg0: i32) -> (i32, i32) {
    %c0_i32 = arith.constant 0 : i32
    %c0_i32_0 = arith.constant 0 : i32
    %c0_i32_1 = arith.constant 0 : i32
    return %c0_i32, %c0_i32_0 : i32, i32
  }
  func.func @transform_5(%arg0: i32) -> (i32, i32) {
    %c0_i32 = arith.constant 0 : i32
    %c0_i32_0 = arith.constant 0 : i32
    %c0_i32_1 = arith.constant 0 : i32
    return %c0_i32, %c0_i32_0 : i32, i32
  }
  func.func @transform_6(%arg0: i32) -> (i32, i32) {
    %c0_i32 = arith.constant 0 : i32
    %c0_i32_0 = arith.constant 0 : i32
    %c0_i32_1 = arith.constant 0 : i32
    return %c0_i32, %c0_i32_0 : i32, i32
  }
  func.func @transform_7(%arg0: i32) -> (i32, i32) {
    %c0_i32 = arith.constant 0 : i32
    %c0_i32_0 = arith.constant 0 : i32
    %c0_i32_1 = arith.constant 0 : i32
    return %c0_i32, %c0_i32_0 : i32, i32
  }
  func.func @transform_8(%arg0: i32) -> (i32, i32) {
    %c0_i32 = arith.constant 0 : i32
    %c0_i32_0 = arith.constant 0 : i32
    %c0_i32_1 = arith.constant 0 : i32
    return %c0_i32, %c0_i32_0 : i32, i32
  }
  func.func @transform_9(%arg0: i32) -> (i32, i32) {
    %c0_i32 = arith.constant 0 : i32
    %c0_i32_0 = arith.constant 0 : i32
    %c0_i32_1 = arith.constant 0 : i32
    return %c0_i32, %c0_i32_0 : i32, i32
  }
  func.func @transform_10(%arg0: i32) -> (i32, i32) {
    %c0_i32 = arith.constant 0 : i32
    %c0_i32_0 = arith.constant 0 : i32
    %c0_i32_1 = arith.constant 0 : i32
    return %c0_i32, %c0_i32_0 : i32, i32
  }
  func.func @transform_11(%arg0: i32) -> (i32, i32) {
    %c0_i32 = arith.constant 0 : i32
    %c0_i32_0 = arith.constant 0 : i32
    %c0_i32_1 = arith.constant 0 : i32
    return %c0_i32, %c0_i32_0 : i32, i32
  }
  func.func @transform_12(%arg0: i32) -> (i32, i32) {
    %c0_i32 = arith.constant 0 : i32
    %c0_i32_0 = arith.constant 0 : i32
    %c0_i32_1 = arith.constant 0 : i32
    return %c0_i32, %c0_i32_0 : i32, i32
  }
  func.func @transform_13(%arg0: i32) -> (i32, i32) {
    %c0_i32 = arith.constant 0 : i32
    %c0_i32_0 = arith.constant 0 : i32
    %c0_i32_1 = arith.constant 0 : i32
    return %c0_i32, %c0_i32_0 : i32, i32
  }
  func.func @transform_14(%arg0: i32) -> (i32, i32, i32) {
    %c0_i32 = arith.constant 0 : i32
    %c0_i32_0 = arith.constant 0 : i32
    %c0_i32_1 = arith.constant 0 : i32
    return %arg0, %c0_i32, %c0_i32_0 : i32, i32, i32
  }
}

</mosaic_0001>

<llo_original>
// kernel: block_forward.1
$region0: #{block_forward.1}
  #allocation0 [shape = 'u32[]', space=smem, size = 0x4, offset = 0x4, fixed_abs, tag = 'smem constant byte address 0x4 - core index']
  #allocation1 [shape = 'u32[72,128]{1,0:T(1,128)}', space=vmem, size = 0x9000, scoped, tag = 'internal scratch']
  %s0 = inlined_call_operand.vmem [shape: f32[2,4,342], index: 0, kind: input, shape index: {}]
  %s1 = inlined_call_operand.vmem [shape: f32[1,342], index: 1, kind: input, shape index: {}]
  %s2 = inlined_call_operand.vmem [shape: bf16[8,4], index: 2, kind: input, shape index: {}]
  %s3 = inlined_call_operand.vmem [shape: f32[8,1], index: 3, kind: input, shape index: {}]
  %s4 = inlined_call_operand.vmem [shape: f32[8,1], index: 4, kind: input, shape index: {}]
  %s5 = inlined_call_operand.vmem [shape: f32[8,9], index: 5, kind: input, shape index: {}]
  %s6 = inlined_call_operand.vmem [shape: f32[8,1], index: 6, kind: input, shape index: {}]
  %s7 = inlined_call_operand.vmem [shape: f32[8,1], index: 7, kind: input, shape index: {}]
  %s8 = inlined_call_operand.vmem [shape: bf16[8,8], index: 8, kind: input, shape index: {}]
  %s9 = inlined_call_operand.vmem [shape: f32[8,1], index: 9, kind: input, shape index: {}]
  %s10 = inlined_call_operand.vmem [shape: f32[8,1], index: 10, kind: input, shape index: {}]
  %s11 = inlined_call_operand.vmem [shape: bf16[8,4], index: 11, kind: input, shape index: {}]
  %s12 = inlined_call_operand.vmem [shape: f32[8,1], index: 12, kind: input, shape index: {}]
  %s13 = inlined_call_operand.vmem [shape: f32[8,1], index: 13, kind: input, shape index: {}]
  %s14 = inlined_call_operand.vmem [shape: f32[2,8,288], index: 14, kind: output, shape index: {}]
  %s15 = sld [smem:[#allocation0]]
  $region89: #{block_forward.1} parent=0
    _
  %s17 = ssub.s32 1, %s15
  %s18 = scalar_select 0, %s17, %s15
  loop: start=0, step=1, limit=4
  $region2: #{block_forward.1} parent=0 // loop_pre_header
    _
  $region3: #{block_forward.1} parent=0 // loop_header
    %s20 = sphi 0, %s24
    %p21 = scmp.ge.s32.totalorder %s20, 4
    %s30 = sphi 0, %s32
    %s33 = sphi 0, %s30
    %s34 = sphi 0, %s33
    %s50 = sphi 0, %s34
    %s54 = sphi 0, %s54
    %s56 = sphi 0, %s54
    %s57 = sphi 0, %s56
    %s71 = sphi 0, %s57
    %s75 = sphi 0, %s75
    %s77 = sphi 0, %s75
    %s78 = sphi 0, %s77
    %s92 = sphi 0, %s78
    %s96 = sphi 0, %s96
    %s98 = sphi 0, %s96
    %s99 = sphi 0, %s98
    %s113 = sphi 0, %s99
    %s117 = sphi 0, %s117
    %s119 = sphi 0, %s117
    %s120 = sphi 0, %s119
    %s134 = sphi 0, %s120
    %s138 = sphi 0, %s138
    %s140 = sphi 0, %s138
    %s141 = sphi 0, %s140
    %s155 = sphi 0, %s141
    %s159 = sphi 0, %s159
    %s161 = sphi 0, %s159
    %s162 = sphi 0, %s161
    %s176 = sphi 0, %s162
    %s180 = sphi 0, %s180
    %s182 = sphi 0, %s180
    %s183 = sphi 0, %s182
    %s197 = sphi 0, %s183
    %s201 = sphi 0, %s201
    %s203 = sphi 0, %s201
    %s204 = sphi 0, %s203
    %s218 = sphi 0, %s204
    %s222 = sphi 0, %s222
    %s224 = sphi 0, %s222
    %s225 = sphi 0, %s224
    %s239 = sphi 0, %s225
    %s243 = sphi 0, %s243
    %s245 = sphi 0, %s243
    %s246 = sphi 0, %s245
    %s260 = sphi 0, %s246
    %s264 = sphi 0, %s264
    %s266 = sphi 0, %s264
    %s267 = sphi 0, %s266
    %s281 = sphi 0, %s267
    %s285 = sphi 0, %s285
    %s287 = sphi 0, %s285
    %s288 = sphi 0, %s287
    %s302 = sphi 0, %s288
    %s306 = sphi 0, %s306
    %s308 = sphi 0, %s306
    %s309 = sphi 0, %s308
    %s323 = sphi 0, %s309
    %s329 = sphi 0, %s331
    %s332 = sphi 0, %s329
    %s333 = sphi 0, %s332
    %s349 = sphi 0, %s333
  $region4: #{block_forward.1} parent=0 // loop_header_branch
    %23 = sbr.rel (%p21) target = $region8
  $region5: #{block_forward.1} parent=0 // loop_body
    %s25 = ssub.s32 %s20, 1
    %s26 = ssub.s32 %s20, 2
    %s27 = sadd.s32 %s20, 1
    %s28 = ssub.s32 %s20, %s27
    %p29 = scmp.eq.s32.totalorder %s28, 0
    %s31 = sadd.s32 %s30, 1
    %s32 = scalar_select %p29, %s30, %s31
    %p35 = pneg %p29
    %p36 = scmp.eq.s32.totalorder %s20, 1
    %p37 = por %p35, %p36
    %p38 = scmp.ne.s32.totalorder %s30, %s33
    %p39 = scmp.eq.s32.totalorder %s20, 0
    %p40 = por %p38, %p39
    %p41 = scmp.ne.s32.totalorder %s30, %s33
    %p42 = scmp.eq.s32.totalorder %s25, 1
    %p43 = por %p41, %p42
    %p44 = scmp.ne.s32.totalorder %s33, %s34
    %p45 = scmp.eq.s32.totalorder %s25, 0
    %p46 = por %p44, %p45
    %p47 = scmp.ne.s32.totalorder %s33, %s34
    %p48 = scmp.eq.s32.totalorder %s26, 1
    %p49 = por %p47, %p48
    %p51 = scmp.ne.s32.totalorder %s34, %s50
    %p52 = scmp.eq.s32.totalorder %s26, 0
    %p53 = por %p51, %p52
    %s55 = sadd.s32 %s54, 1
    %p58 = scmp.eq.s32.totalorder %s20, 1
    %p59 = scmp.ne.s32.totalorder %s54, %s56
    %p60 = scmp.eq.s32.totalorder %s20, 0
    %p61 = por %p59, %p60
    %p62 = scmp.ne.s32.totalorder %s54, %s56
    %p63 = scmp.eq.s32.totalorder %s25, 1
    %p64 = por %p62, %p63
    %p65 = scmp.ne.s32.totalorder %s56, %s57
    %p66 = scmp.eq.s32.totalorder %s25, 0
    %p67 = por %p65, %p66
    %p68 = scmp.ne.s32.totalorder %s56, %s57
    %p69 = scmp.eq.s32.totalorder %s26, 1
    %p70 = por %p68, %p69
    %p72 = scmp.ne.s32.totalorder %s57, %s71
    %p73 = scmp.eq.s32.totalorder %s26, 0
    %p74 = por %p72, %p73
    %s76 = sadd.s32 %s75, 1
    %p79 = scmp.eq.s32.totalorder %s20, 1
    %p80 = scmp.ne.s32.totalorder %s75, %s77
    %p81 = scmp.eq.s32.totalorder %s20, 0
    %p82 = por %p80, %p81
    %p83 = scmp.ne.s32.totalorder %s75, %s77
    %p84 = scmp.eq.s32.totalorder %s25, 1
    %p85 = por %p83, %p84
    %p86 = scmp.ne.s32.totalorder %s77, %s78
    %p87 = scmp.eq.s32.totalorder %s25, 0
    %p88 = por %p86, %p87
    %p89 = scmp.ne.s32.totalorder %s77, %s78
    %p90 = scmp.eq.s32.totalorder %s26, 1
    %p91 = por %p89, %p90
    %p93 = scmp.ne.s32.totalorder %s78, %s92
    %p94 = scmp.eq.s32.totalorder %s26, 0
    %p95 = por %p93, %p94
    %s97 = sadd.s32 %s96, 1
    %p100 = scmp.eq.s32.totalorder %s20, 1
    %p101 = scmp.ne.s32.totalorder %s96, %s98
    %p102 = scmp.eq.s32.totalorder %s20, 0
    %p103 = por %p101, %p102
    %p104 = scmp.ne.s32.totalorder %s96, %s98
    %p105 = scmp.eq.s32.totalorder %s25, 1
    %p106 = por %p104, %p105
    %p107 = scmp.ne.s32.totalorder %s98, %s99
    %p108 = scmp.eq.s32.totalorder %s25, 0
    %p109 = por %p107, %p108
    %p110 = scmp.ne.s32.totalorder %s98, %s99
    %p111 = scmp.eq.s32.totalorder %s26, 1
    %p112 = por %p110, %p111
    %p114 = scmp.ne.s32.totalorder %s99, %s113
    %p115 = scmp.eq.s32.totalorder %s26, 0
    %p116 = por %p114, %p115
    %s118 = sadd.s32 %s117, 1
    %p121 = scmp.eq.s32.totalorder %s20, 1
    %p122 = scmp.ne.s32.totalorder %s117, %s119
    %p123 = scmp.eq.s32.totalorder %s20, 0
    %p124 = por %p122, %p123
    %p125 = scmp.ne.s32.totalorder %s117, %s119
    %p126 = scmp.eq.s32.totalorder %s25, 1
    %p127 = por %p125, %p126
    %p128 = scmp.ne.s32.totalorder %s119, %s120
    %p129 = scmp.eq.s32.totalorder %s25, 0
    %p130 = por %p128, %p129
    %p131 = scmp.ne.s32.totalorder %s119, %s120
    %p132 = scmp.eq.s32.totalorder %s26, 1
    %p133 = por %p131, %p132
    %p135 = scmp.ne.s32.totalorder %s120, %s134
    %p136 = scmp.eq.s32.totalorder %s26, 0
    %p137 = por %p135, %p136
    %s139 = sadd.s32 %s138, 1
    %p142 = scmp.eq.s32.totalorder %s20, 1
    %p143 = scmp.ne.s32.totalorder %s138, %s140
    %p144 = scmp.eq.s32.totalorder %s20, 0
    %p145 = por %p143, %p144
    %p146 = scmp.ne.s32.totalorder %s138, %s140
    %p147 = scmp.eq.s32.totalorder %s25, 1
    %p148 = por %p146, %p147
    %p149 = scmp.ne.s32.totalorder %s140, %s141
    %p150 = scmp.eq.s32.totalorder %s25, 0
    %p151 = por %p149, %p150
    %p152 = scmp.ne.s32.totalorder %s140, %s141
    %p153 = scmp.eq.s32.totalorder %s26, 1
    %p154 = por %p152, %p153
    %p156 = scmp.ne.s32.totalorder %s141, %s155
    %p157 = scmp.eq.s32.totalorder %s26, 0
    %p158 = por %p156, %p157
    %s160 = sadd.s32 %s159, 1
    %p163 = scmp.eq.s32.totalorder %s20, 1
    %p164 = scmp.ne.s32.totalorder %s159, %s161
    %p165 = scmp.eq.s32.totalorder %s20, 0
    %p166 = por %p164, %p165
    %p167 = scmp.ne.s32.totalorder %s159, %s161
    %p168 = scmp.eq.s32.totalorder %s25, 1
    %p169 = por %p167, %p168
    %p170 = scmp.ne.s32.totalorder %s161, %s162
    %p171 = scmp.eq.s32.totalorder %s25, 0
    %p172 = por %p170, %p171
    %p173 = scmp.ne.s32.totalorder %s161, %s162
    %p174 = scmp.eq.s32.totalorder %s26, 1
    %p175 = por %p173, %p174
    %p177 = scmp.ne.s32.totalorder %s162, %s176
    %p178 = scmp.eq.s32.totalorder %s26, 0
    %p179 = por %p177, %p178
    %s181 = sadd.s32 %s180, 1
    %p184 = scmp.eq.s32.totalorder %s20, 1
    %p185 = scmp.ne.s32.totalorder %s180, %s182
    %p186 = scmp.eq.s32.totalorder %s20, 0
    %p187 = por %p185, %p186
    %p188 = scmp.ne.s32.totalorder %s180, %s182
    %p189 = scmp.eq.s32.totalorder %s25, 1
    %p190 = por %p188, %p189
    %p191 = scmp.ne.s32.totalorder %s182, %s183
    %p192 = scmp.eq.s32.totalorder %s25, 0
    %p193 = por %p191, %p192
    %p194 = scmp.ne.s32.totalorder %s182, %s183
    %p195 = scmp.eq.s32.totalorder %s26, 1
    %p196 = por %p194, %p195
    %p198 = scmp.ne.s32.totalorder %s183, %s197
    %p199 = scmp.eq.s32.totalorder %s26, 0
    %p200 = por %p198, %p199
    %s202 = sadd.s32 %s201, 1
    %p205 = scmp.eq.s32.totalorder %s20, 1
    %p206 = scmp.ne.s32.totalorder %s201, %s203
    %p207 = scmp.eq.s32.totalorder %s20, 0
    %p208 = por %p206, %p207
    %p209 = scmp.ne.s32.totalorder %s201, %s203
    %p210 = scmp.eq.s32.totalorder %s25, 1
    %p211 = por %p209, %p210
    %p212 = scmp.ne.s32.totalorder %s203, %s204
    %p213 = scmp.eq.s32.totalorder %s25, 0
    %p214 = por %p212, %p213
    %p215 = scmp.ne.s32.totalorder %s203, %s204
    %p216 = scmp.eq.s32.totalorder %s26, 1
    %p217 = por %p215, %p216
    %p219 = scmp.ne.s32.totalorder %s204, %s218
    %p220 = scmp.eq.s32.totalorder %s26, 0
    %p221 = por %p219, %p220
    %s223 = sadd.s32 %s222, 1
    %p226 = scmp.eq.s32.totalorder %s20, 1
    %p227 = scmp.ne.s32.totalorder %s222, %s224
    %p228 = scmp.eq.s32.totalorder %s20, 0
    %p229 = por %p227, %p228
    %p230 = scmp.ne.s32.totalorder %s222, %s224
    %p231 = scmp.eq.s32.totalorder %s25, 1
    %p232 = por %p230, %p231
    %p233 = scmp.ne.s32.totalorder %s224, %s225
    %p234 = scmp.eq.s32.totalorder %s25, 0
    %p235 = por %p233, %p234
    %p236 = scmp.ne.s32.totalorder %s224, %s225
    %p237 = scmp.eq.s32.totalorder %s26, 1
    %p238 = por %p236, %p237
    %p240 = scmp.ne.s32.totalorder %s225, %s239
    %p241 = scmp.eq.s32.totalorder %s26, 0
    %p242 = por %p240, %p241
    %s244 = sadd.s32 %s243, 1
    %p247 = scmp.eq.s32.totalorder %s20, 1
    %p248 = scmp.ne.s32.totalorder %s243, %s245
    %p249 = scmp.eq.s32.totalorder %s20, 0
    %p250 = por %p248, %p249
    %p251 = scmp.ne.s32.totalorder %s243, %s245
    %p252 = scmp.eq.s32.totalorder %s25, 1
    %p253 = por %p251, %p252
    %p254 = scmp.ne.s32.totalorder %s245, %s246
    %p255 = scmp.eq.s32.totalorder %s25, 0
    %p256 = por %p254, %p255
    %p257 = scmp.ne.s32.totalorder %s245, %s246
    %p258 = scmp.eq.s32.totalorder %s26, 1
    %p259 = por %p257, %p258
    %p261 = scmp.ne.s32.totalorder %s246, %s260
    %p262 = scmp.eq.s32.totalorder %s26, 0
    %p263 = por %p261, %p262
    %s265 = sadd.s32 %s264, 1
    %p268 = scmp.eq.s32.totalorder %s20, 1
    %p269 = scmp.ne.s32.totalorder %s264, %s266
    %p270 = scmp.eq.s32.totalorder %s20, 0
    %p271 = por %p269, %p270
    %p272 = scmp.ne.s32.totalorder %s264, %s266
    %p273 = scmp.eq.s32.totalorder %s25, 1
    %p274 = por %p272, %p273
    %p275 = scmp.ne.s32.totalorder %s266, %s267
    %p276 = scmp.eq.s32.totalorder %s25, 0
    %p277 = por %p275, %p276
    %p278 = scmp.ne.s32.totalorder %s266, %s267
    %p279 = scmp.eq.s32.totalorder %s26, 1
    %p280 = por %p278, %p279
    %p282 = scmp.ne.s32.totalorder %s267, %s281
    %p283 = scmp.eq.s32.totalorder %s26, 0
    %p284 = por %p282, %p283
    %s286 = sadd.s32 %s285, 1
    %p289 = scmp.eq.s32.totalorder %s20, 1
    %p290 = scmp.ne.s32.totalorder %s285, %s287
    %p291 = scmp.eq.s32.totalorder %s20, 0
    %p292 = por %p290, %p291
    %p293 = scmp.ne.s32.totalorder %s285, %s287
    %p294 = scmp.eq.s32.totalorder %s25, 1
    %p295 = por %p293, %p294
    %p296 = scmp.ne.s32.totalorder %s287, %s288
    %p297 = scmp.eq.s32.totalorder %s25, 0
    %p298 = por %p296, %p297
    %p299 = scmp.ne.s32.totalorder %s287, %s288
    %p300 = scmp.eq.s32.totalorder %s26, 1
    %p301 = por %p299, %p300
    %p303 = scmp.ne.s32.totalorder %s288, %s302
    %p304 = scmp.eq.s32.totalorder %s26, 0
    %p305 = por %p303, %p304
    %s307 = sadd.s32 %s306, 1
    %p310 = scmp.eq.s32.totalorder %s20, 1
    %p311 = scmp.ne.s32.totalorder %s306, %s308
    %p312 = scmp.eq.s32.totalorder %s20, 0
    %p313 = por %p311, %p312
    %p314 = scmp.ne.s32.totalorder %s306, %s308
    %p315 = scmp.eq.s32.totalorder %s25, 1
    %p316 = por %p314, %p315
    %p317 = scmp.ne.s32.totalorder %s308, %s309
    %p318 = scmp.eq.s32.totalorder %s25, 0
    %p319 = por %p317, %p318
    %p320 = scmp.ne.s32.totalorder %s308, %s309
    %p321 = scmp.eq.s32.totalorder %s26, 1
    %p322 = por %p320, %p321
    %p324 = scmp.ne.s32.totalorder %s309, %s323
    %p325 = scmp.eq.s32.totalorder %s26, 0
    %p326 = por %p324, %p325
    %s327 = ssub.s32 %s20, %s27
    %p328 = scmp.eq.s32.totalorder %s327, 0
    %s330 = sadd.s32 %s329, 1
    %s331 = scalar_select %p328, %s329, %s330
    %p334 = pneg %p328
    %p335 = scmp.eq.s32.totalorder %s20, 1
    %p336 = por %p334, %p335
    %p337 = scmp.ne.s32.totalorder %s329, %s332
    %p338 = scmp.eq.s32.totalorder %s20, 0
    %p339 = por %p337, %p338
    %p340 = scmp.ne.s32.totalorder %s329, %s332
    %p341 = scmp.eq.s32.totalorder %s25, 1
    %p342 = por %p340, %p341
    %p343 = scmp.ne.s32.totalorder %s332, %s333
    %p344 = scmp.eq.s32.totalorder %s25, 0
    %p345 = por %p343, %p344
    %p346 = scmp.ne.s32.totalorder %s332, %s333
    %p347 = scmp.eq.s32.totalorder %s26, 1
    %p348 = por %p346, %p347
    %p350 = scmp.ne.s32.totalorder %s333, %s349
    %p351 = scmp.eq.s32.totalorder %s26, 0
    %p352 = por %p350, %p351
    %p353 = scmp.le.s32.totalorder 1, %s20
    %p354 = scmp.lt.s32.totalorder %s20, 3
    %p355 = pnand %p353, %p354
    %p356 = pneg %p355
    // Predicated region
    $region9: #{block_forward.1} parent=5 // pred_check
      _
    $region10: #{block_forward.1} parent=5 // pred_check_branch
      %358 = sbr.rel (%p355) target = $region12
    $region11: #{block_forward.1} parent=5 // pred_region
      %s359 = ssub.s32 %s20, 1
      // Predicated region
      $region13: #{block_forward.1} parent=11 // pred_check
        %p360 = pneg %p67
      $region14: #{block_forward.1} parent=11 // pred_check_branch
        %362 = sbr.rel (%p360) target = $region16
      $region15: #{block_forward.1} parent=11 // pred_region
        _
      $region16: #{block_forward.1} parent=11 // pred_fallthru
        _
      // Predicated region
      $region17: #{block_forward.1} parent=11 // pred_check
        %p363 = pneg %p88
      $region18: #{block_forward.1} parent=11 // pred_check_branch
        %365 = sbr.rel (%p363) target = $region20
      $region19: #{block_forward.1} parent=11 // pred_region
        _
      $region20: #{block_forward.1} parent=11 // pred_fallthru
        _
      // Predicated region
      $region21: #{block_forward.1} parent=11 // pred_check
        %p366 = pneg %p109
      $region22: #{block_forward.1} parent=11 // pred_check_branch
        %368 = sbr.rel (%p366) target = $region24
      $region23: #{block_forward.1} parent=11 // pred_region
        _
      $region24: #{block_forward.1} parent=11 // pred_fallthru
        _
      // Predicated region
      $region25: #{block_forward.1} parent=11 // pred_check
        %p369 = pneg %p130
      $region26: #{block_forward.1} parent=11 // pred_check_branch
        %371 = sbr.rel (%p369) target = $region28
      $region27: #{block_forward.1} parent=11 // pred_region
        _
      $region28: #{block_forward.1} parent=11 // pred_fallthru
        _
      // Predicated region
      $region29: #{block_forward.1} parent=11 // pred_check
        %p372 = pneg %p151
      $region30: #{block_forward.1} parent=11 // pred_check_branch
        %374 = sbr.rel (%p372) target = $region32
      $region31: #{block_forward.1} parent=11 // pred_region
        _
      $region32: #{block_forward.1} parent=11 // pred_fallthru
        _
      // Predicated region
      $region33: #{block_forward.1} parent=11 // pred_check
        %p375 = pneg %p172
      $region34: #{block_forward.1} parent=11 // pred_check_branch
        %377 = sbr.rel (%p375) target = $region36
      $region35: #{block_forward.1} parent=11 // pred_region
        _
      $region36: #{block_forward.1} parent=11 // pred_fallthru
        _
      // Predicated region
      $region37: #{block_forward.1} parent=11 // pred_check
        %p378 = pneg %p193
      $region38: #{block_forward.1} parent=11 // pred_check_branch
        %380 = sbr.rel (%p378) target = $region40
      $region39: #{block_forward.1} parent=11 // pred_region
        _
      $region40: #{block_forward.1} parent=11 // pred_fallthru
        _
      // Predicated region
      $region41: #{block_forward.1} parent=11 // pred_check
        %p381 = pneg %p214
      $region42: #{block_forward.1} parent=11 // pred_check_branch
        %383 = sbr.rel (%p381) target = $region44
      $region43: #{block_forward.1} parent=11 // pred_region
        _
      $region44: #{block_forward.1} parent=11 // pred_fallthru
        _
      // Predicated region
      $region45: #{block_forward.1} parent=11 // pred_check
        %p384 = pneg %p235
      $region46: #{block_forward.1} parent=11 // pred_check_branch
        %386 = sbr.rel (%p384) target = $region48
      $region47: #{block_forward.1} parent=11 // pred_region
        _
      $region48: #{block_forward.1} parent=11 // pred_fallthru
        _
      // Predicated region
      $region49: #{block_forward.1} parent=11 // pred_check
        %p387 = pneg %p256
      $region50: #{block_forward.1} parent=11 // pred_check_branch
        %389 = sbr.rel (%p387) target = $region52
      $region51: #{block_forward.1} parent=11 // pred_region
        _
      $region52: #{block_forward.1} parent=11 // pred_fallthru
        _
      // Predicated region
      $region53: #{block_forward.1} parent=11 // pred_check
        %p390 = pneg %p277
      $region54: #{block_forward.1} parent=11 // pred_check_branch
        %392 = sbr.rel (%p390) target = $region56
      $region55: #{block_forward.1} parent=11 // pred_region
        _
      $region56: #{block_forward.1} parent=11 // pred_fallthru
        _
      // Predicated region
      $region57: #{block_forward.1} parent=11 // pred_check
        %p393 = pneg %p298
      $region58: #{block_forward.1} parent=11 // pred_check_branch
        %395 = sbr.rel (%p393) target = $region60
      $region59: #{block_forward.1} parent=11 // pred_region
        _
      $region60: #{block_forward.1} parent=11 // pred_fallthru
        _
      // Predicated region
      $region61: #{block_forward.1} parent=11 // pred_check
        %p396 = pneg %p319
      $region62: #{block_forward.1} parent=11 // pred_check_branch
        %398 = sbr.rel (%p396) target = $region64
      $region63: #{block_forward.1} parent=11 // pred_region
        _
      $region64: #{block_forward.1} parent=11 // pred_fallthru
        _
    $region12: #{block_forward.1} parent=5 // pred_fallthru
      _
    %p399 = scmp.lt.s32.totalorder %s20, 2
    // Predicated region
    $region65: #{block_forward.1} parent=5 // pred_check
      %p400 = pneg %p399
    $region66: #{block_forward.1} parent=5 // pred_check_branch
      %402 = sbr.rel (%p400) target = $region68
    $region67: #{block_forward.1} parent=5 // pred_region
      // Predicated region
      $region69: #{block_forward.1} parent=67 // pred_check
        %p403 = pneg %p40
      $region70: #{block_forward.1} parent=67 // pred_check_branch
        %405 = sbr.rel (%p403) target = $region72
      $region71: #{block_forward.1} parent=67 // pred_region
        %p406 = scmp.lt.s32.totalorder %s20, 1
        %s407 = scalar_select %p406, %s20, 1
        %s408 = smul.addr %s407, 3
        %s409 = smul.addr %s408, 4
        %s410 = scalar_lea.vmem %s0, %s409
      $region72: #{block_forward.1} parent=67 // pred_fallthru
        _
    $region68: #{block_forward.1} parent=5 // pred_fallthru
      _
    %p411 = scmp.le.s32.totalorder 1, %s20
    %p412 = scmp.lt.s32.totalorder %s20, 3
    %p413 = pnand %p411, %p412
    %p414 = pneg %p413
    // Predicated region
    $region73: #{block_forward.1} parent=5 // pred_check
      _
    $region74: #{block_forward.1} parent=5 // pred_check_branch
      %416 = sbr.rel (%p413) target = $region76
    $region75: #{block_forward.1} parent=5 // pred_region
      %s417 = ssub.s32 %s20, 1
      %p418 = scmp.lt.s32.totalorder %s25, 1
      %s419 = scalar_select %p418, %s25, 1
      %s420 = smul.addr %s419, 3
      %s421 = smul.addr %s420, 4
      %s422 = scalar_lea.vmem %s0, %s421
      %p423 = pneg %p46
      %p424 = pneg %p43
      %p425 = pneg %p67
      %p426 = pneg %p64
      %p427 = pneg %p88
      %p428 = pneg %p85
      %p429 = pneg %p109
      %p430 = pneg %p106
      %p431 = pneg %p130
      %p432 = pneg %p127
      %p433 = pneg %p151
      %p434 = pneg %p148
      %p435 = pneg %p172
      %p436 = pneg %p169
      %p437 = pneg %p193
      %p438 = pneg %p190
      %p439 = pneg %p214
      %p440 = pneg %p211
      %p441 = pneg %p235
      %p442 = pneg %p232
      %p443 = pneg %p256
      %p444 = pneg %p253
      %p445 = pneg %p277
      %p446 = pneg %p274
      %p447 = pneg %p298
      %p448 = pneg %p295
      %p449 = pneg %p319
      %p450 = pneg %p316
      %p451 = pneg %p345
      %p452 = pneg %p342
      %p453 = scmp.lt.s32.totalorder %s25, 1
      %s454 = scalar_select %p453, %s25, 1
      %s455 = smul.addr %s454, 3
      %s456 = smul.addr %s455, 8
      %s457 = scalar_lea.vmem %s14, %s456
      %p458 = scmp.lt.s32.totalorder %s25, 1
      %s459 = scalar_select %p458, %s25, 1
      %s460 = smul.addr %s459, 3
      %s461 = smul.addr %s460, 4
      %s462 = scalar_lea.vmem %s0, %s461
      %p463 = scmp.lt.s32.totalorder %s25, 1
      %s464 = scalar_select %p463, %s25, 1
      %s465 = smul.addr %s464, 3
      %s466 = smul.addr %s465, 8
      %s467 = scalar_lea.vmem %s14, %s466
      %v469 = vld [vmem:[%s462] sm:$0xff]
      %v470 = vld [vmem:[%s462 + $0x8] sm:$0xf]
      %v471 = vld [vmem:[%s5] sm:$0xff]
      %v472 = vld [vmem:[%s2] sm:$0xf]
      %475 = vst [vmem:[#allocation1] ss:$2 sm:$0xff] %v469
      %s476 = scalar_lea.vmem [#allocation1], 16
      %477 = vst [vmem:[%s476] ss:$2 sm:$0xff] %v470
      %v478 = vld.sshfl [vmem:[#allocation1] sm:$0xff pattern:$0x75316420]
      %v479 = vld.sshfl [vmem:[#allocation1 + $0x8] sm:$0xff pattern:$0x75316420]
      %v480 = vld.sshfl [vmem:[#allocation1 + $0x10] sm:$0xff pattern:$0x75316420]
      %v484 = vpack.c.bf16 %v478, %v478
      %v485 = vpack.c.bf16 %v479, %v479
      %v486 = vpack.c.bf16 %v480, %v480
      %vm487 = vcmask 31744
      %v489 = vsel %vm487, %v472, 0
      %vm491 = vcmask 1041408
      %v493 = vsel %vm491, %v484, 0
      %v496 = vsel %vm491, %v485, 0
      %v499 = vsel %vm491, %v486, 0
      %501 = vmatpush.bf16.msra.mxu0 0
      %502 = vmatpush.bf16.msra.mxu0 0
      %503 = vmatpush.bf16.msra.mxu0 0
      %504 = vmatpush.bf16.msra.mxu0 0
      %505 = vmatpush.bf16.msra.mxu0 0
      %506 = vmatpush.bf16.msra.mxu0 0
      %507 = vmatpush.bf16.msra.mxu0 0
      %508 = vmatpush.bf16.msra.mxu0 %v493
      %509 = vmatmul.bf16.gmra.mxu0 %v489
      %v510 = vpop.f32.mrf.mxu0
      %v511 = vadd.f32 0.0, %v510
      %v512 = vpop.f32.mrf.mxu0
      %513 = vdwg.mxu0
      %514 = vmatpush.bf16.msra.mxu0 0
      %515 = vmatpush.bf16.msra.mxu0 0
      %516 = vmatpush.bf16.msra.mxu0 0
      %517 = vmatpush.bf16.msra.mxu0 0
      %518 = vmatpush.bf16.msra.mxu0 0
      %519 = vmatpush.bf16.msra.mxu0 0
      %520 = vmatpush.bf16.msra.mxu0 0
      %521 = vmatpush.bf16.msra.mxu0 %v496
      %522 = vmatmul.bf16.gmra.mxu0 %v489
      %v523 = vpop.f32.mrf.mxu0
      %v524 = vadd.f32 0.0, %v523
      %v525 = vpop.f32.mrf.mxu0
      %526 = vdwg.mxu0
      %527 = vmatpush.bf16.msra.mxu0 0
      %528 = vmatpush.bf16.msra.mxu0 0
      %529 = vmatpush.bf16.msra.mxu0 0
      %530 = vmatpush.bf16.msra.mxu0 0
      %531 = vmatpush.bf16.msra.mxu0 0
      %532 = vmatpush.bf16.msra.mxu0 0
      %533 = vmatpush.bf16.msra.mxu0 0
      %534 = vmatpush.bf16.msra.mxu0 %v499
      %535 = vmatmul.bf16.gmra.mxu0 %v489
      %v536 = vpop.f32.mrf.mxu0
      %v537 = vadd.f32 0.0, %v536
      %v538 = vpop.f32.mrf.mxu0
      %539 = vdwg.mxu0
      %v540 = vld [vmem:[%s3] sm:$0xff]
      %542 = vset.pattern.permute.xlu0 0
      %543 = vperm.xlu0 %542, %v540
      %v544 = vpop.permute.xlu0 %543
      %v546 = vmul.f32 %v511, %v544
      %v547 = vmul.f32 %v524, %v544
      %v548 = vmul.f32 %v537, %v544
      %v549 = vld [vmem:[%s4] sm:$0xff]
      %551 = vset.pattern.permute.xlu0 0
      %552 = vperm.xlu0 %551, %v549
      %v553 = vpop.permute.xlu0 %552
      %v555 = vadd.f32 %v546, %v553
      %v556 = vadd.f32 %v547, %v553
      %v557 = vadd.f32 %v548, %v553
      %v558 = vmax.f32 %v555, 0.0
      %v559 = vmax.f32 %v556, 0.0
      %v560 = vmax.f32 %v557, 0.0
      %v561 = vld [vmem:[%s1] sm:$0x7]
      %v563 = vperm.slane %v561, 0
      %v564 = vperm.slane %v561, 1
      %v565 = vperm.slane %v561, 2
      %v569 = vmul.f32 %v558, %v563
      %v570 = vmul.f32 %v559, %v564
      %v571 = vmul.f32 %v560, %v565
      %573 = vset.pattern.permute.xlu0 0
      %574 = vperm.xlu0 %573, %v471
      %v575 = vpop.permute.xlu0 %574
      %v577 = vmul.f32 %v569, %v575
      %v578 = vmul.f32 %v570, %v575
      %v579 = vmul.f32 %v571, %v575
      %v580 = vadd.f32 %v577, 0.0
      %v581 = vadd.f32 %v578, 0.0
      %v582 = vadd.f32 %v579, 0.0
      %583 = vset.pattern.permute.xlu0 1
      %584 = vperm.xlu0 %583, %v471
      %v585 = vpop.permute.xlu0 %584
      %v587 = vmul.f32 %v569, %v585
      %v588 = vmul.f32 %v570, %v585
      %v589 = vmul.f32 %v571, %v585
      %593 = vrot.lane.b32.xlu0 %v587, 127
      %v594 = vpop.permute.xlu0 %593
      %595 = vrot.lane.b32.xlu0 %v588, 127
      %v596 = vpop.permute.xlu0 %595
      %597 = vrot.lane.b32.xlu0 %v589, 127
      %v598 = vpop.permute.xlu0 %597
      %vm599 = vcmask 1039360
      %v600 = vsel %vm599, %v594, %v596
      %v601 = vsel %vm599, %v596, %v598
      %v605 = vadd.f32 %v580, %v600
      %v606 = vadd.f32 %v581, %v601
      %v607 = vadd.f32 %v582, %v598
      %608 = vset.pattern.permute.xlu0 2
      %609 = vperm.xlu0 %608, %v471
      %v610 = vpop.permute.xlu0 %609
      %v612 = vmul.f32 %v569, %v610
      %v613 = vmul.f32 %v570, %v610
      %v614 = vmul.f32 %v571, %v610
      %618 = vrot.lane.b32.xlu0 %v612, 126
      %v619 = vpop.permute.xlu0 %618
      %620 = vrot.lane.b32.xlu0 %v613, 126
      %v621 = vpop.permute.xlu0 %620
      %622 = vrot.lane.b32.xlu0 %v614, 126
      %v623 = vpop.permute.xlu0 %622
      %vm624 = vcmask 1031168
      %v625 = vsel %vm624, %v619, %v621
      %v626 = vsel %vm624, %v621, %v623
      %v630 = vadd.f32 %v605, %v625
      %v631 = vadd.f32 %v606, %v626
      %v632 = vadd.f32 %v607, %v623
      %633 = vset.pattern.permute.xlu0 3
      %634 = vperm.xlu0 %633, %v471
      %v635 = vpop.permute.xlu0 %634
      %v637 = vmul.f32 %v569, %v635
      %v638 = vmul.f32 %v570, %v635
      %v639 = vmul.f32 %v571, %v635
      %643 = vrot.lane.b32.xlu0 %v637, 110
      %v644 = vpop.permute.xlu0 %643
      %645 = vrot.lane.b32.xlu0 %v638, 110
      %v646 = vpop.permute.xlu0 %645
      %647 = vrot.lane.b32.xlu0 %v639, 110
      %v648 = vpop.permute.xlu0 %647
      %vm649 = vcmask 900096
      %v650 = vsel %vm649, %v644, %v646
      %v651 = vsel %vm649, %v646, %v648
      %v655 = vadd.f32 %v630, %v650
      %v656 = vadd.f32 %v631, %v651
      %v657 = vadd.f32 %v632, %v648
      %658 = vset.pattern.permute.xlu0 4
      %659 = vperm.xlu0 %658, %v471
      %v660 = vpop.permute.xlu0 %659
      %v662 = vmul.f32 %v569, %v660
      %v663 = vmul.f32 %v570, %v660
      %v664 = vmul.f32 %v571, %v660
      %668 = vrot.lane.b32.xlu0 %v662, 109
      %v669 = vpop.permute.xlu0 %668
      %670 = vrot.lane.b32.xlu0 %v663, 109
      %v671 = vpop.permute.xlu0 %670
      %672 = vrot.lane.b32.xlu0 %v664, 109
      %v673 = vpop.permute.xlu0 %672
      %vm674 = vcmask 891904
      %v675 = vsel %vm674, %v669, %v671
      %v676 = vsel %vm674, %v671, %v673
      %v680 = vadd.f32 %v655, %v675
      %v681 = vadd.f32 %v656, %v676
      %v682 = vadd.f32 %v657, %v673
      %683 = vset.pattern.permute.xlu0 5
      %684 = vperm.xlu0 %683, %v471
      %v685 = vpop.permute.xlu0 %684
      %v687 = vmul.f32 %v569, %v685
      %v688 = vmul.f32 %v570, %v685
      %v689 = vmul.f32 %v571, %v685
      %693 = vrot.lane.b32.xlu0 %v687, 108
      %v694 = vpop.permute.xlu0 %693
      %695 = vrot.lane.b32.xlu0 %v688, 108
      %v696 = vpop.permute.xlu0 %695
      %697 = vrot.lane.b32.xlu0 %v689, 108
      %v698 = vpop.permute.xlu0 %697
      %vm699 = vcmask 883712
      %v700 = vsel %vm699, %v694, %v696
      %v701 = vsel %vm699, %v696, %v698
      %v705 = vadd.f32 %v680, %v700
      %v706 = vadd.f32 %v681, %v701
      %v707 = vadd.f32 %v682, %v698
      %708 = vset.pattern.permute.xlu0 6
      %709 = vperm.xlu0 %708, %v471
      %v710 = vpop.permute.xlu0 %709
      %v712 = vmul.f32 %v569, %v710
      %v713 = vmul.f32 %v570, %v710
      %v714 = vmul.f32 %v571, %v710
      %718 = vrot.lane.b32.xlu0 %v712, 92
      %v719 = vpop.permute.xlu0 %718
      %720 = vrot.lane.b32.xlu0 %v713, 92
      %v721 = vpop.permute.xlu0 %720
      %722 = vrot.lane.b32.xlu0 %v714, 92
      %v723 = vpop.permute.xlu0 %722
      %vm724 = vcmask 752640
      %v725 = vsel %vm724, %v719, %v721
      %v726 = vsel %vm724, %v721, %v723
      %v730 = vadd.f32 %v705, %v725
      %v731 = vadd.f32 %v706, %v726
      %v732 = vadd.f32 %v707, %v723
      %733 = vset.pattern.permute.xlu0 7
      %734 = vperm.xlu0 %733, %v471
      %v735 = vpop.permute.xlu0 %734
      %v737 = vmul.f32 %v569, %v735
      %v738 = vmul.f32 %v570, %v735
      %v739 = vmul.f32 %v571, %v735
      %743 = vrot.lane.b32.xlu0 %v737, 91
      %v744 = vpop.permute.xlu0 %743
      %745 = vrot.lane.b32.xlu0 %v738, 91
      %v746 = vpop.permute.xlu0 %745
      %747 = vrot.lane.b32.xlu0 %v739, 91
      %v748 = vpop.permute.xlu0 %747
      %vm749 = vcmask 744448
      %v750 = vsel %vm749, %v744, %v746
      %v751 = vsel %vm749, %v746, %v748
      %v755 = vadd.f32 %v730, %v750
      %v756 = vadd.f32 %v731, %v751
      %v757 = vadd.f32 %v732, %v748
      %758 = vset.pattern.permute.xlu0 8
      %759 = vperm.xlu0 %758, %v471
      %v760 = vpop.permute.xlu0 %759
      %v762 = vmul.f32 %v569, %v760
      %v763 = vmul.f32 %v570, %v760
      %v764 = vmul.f32 %v571, %v760
      %768 = vrot.lane.b32.xlu0 %v762, 90
      %v769 = vpop.permute.xlu0 %768
      %770 = vrot.lane.b32.xlu0 %v763, 90
      %v771 = vpop.permute.xlu0 %770
      %772 = vrot.lane.b32.xlu0 %v764, 90
      %v773 = vpop.permute.xlu0 %772
      %vm774 = vcmask 736256
      %v775 = vsel %vm774, %v769, %v771
      %v776 = vsel %vm774, %v771, %v773
      %v780 = vadd.f32 %v755, %v775
      %v781 = vadd.f32 %v756, %v776
      %v782 = vadd.f32 %v757, %v773
      %v783 = vld [vmem:[%s6] sm:$0xff]
      %785 = vset.pattern.permute.xlu0 0
      %786 = vperm.xlu0 %785, %v783
      %v787 = vpop.permute.xlu0 %786
      %v789 = vmul.f32 %v780, %v787
      %v790 = vmul.f32 %v781, %v787
      %v791 = vmul.f32 %v782, %v787
      %v792 = vld [vmem:[%s7] sm:$0xff]
      %794 = vset.pattern.permute.xlu0 0
      %795 = vperm.xlu0 %794, %v792
      %v796 = vpop.permute.xlu0 %795
      %v798 = vadd.f32 %v789, %v796
      %v799 = vadd.f32 %v790, %v796
      %v800 = vadd.f32 %v791, %v796
      %v801 = vmax.f32 %v798, 0.0
      %v802 = vmax.f32 %v799, 0.0
      %v803 = vmax.f32 %v800, 0.0
      %v804 = vld [vmem:[%s8] sm:$0xf]
      %v805 = vpack.c.bf16 %v801, %v801
      %v806 = vpack.c.bf16 %v802, %v802
      %v807 = vpack.c.bf16 %v803, %v803
      %vm808 = vcmask 64512
      %v810 = vsel %vm808, %v804, 0
      %vm812 = vcmask 1043456
      %v814 = vsel %vm812, %v805, 0
      %v817 = vsel %vm812, %v806, 0
      %v820 = vsel %vm812, %v807, 0
      %822 = vmatpush.bf16.msra.mxu0 0
      %823 = vmatpush.bf16.msra.mxu0 0
      %824 = vmatpush.bf16.msra.mxu0 0
      %825 = vmatpush.bf16.msra.mxu0 0
      %826 = vmatpush.bf16.msra.mxu0 0
      %827 = vmatpush.bf16.msra.mxu0 0
      %828 = vmatpush.bf16.msra.mxu0 0
      %829 = vmatpush.bf16.msra.mxu0 %v814
      %830 = vmatmul.bf16.gmra.mxu0 %v810
      %v831 = vpop.f32.mrf.mxu0
      %v832 = vadd.f32 0.0, %v831
      %v833 = vpop.f32.mrf.mxu0
      %834 = vdwg.mxu0
      %835 = vmatpush.bf16.msra.mxu0 0
      %836 = vmatpush.bf16.msra.mxu0 0
      %837 = vmatpush.bf16.msra.mxu0 0
      %838 = vmatpush.bf16.msra.mxu0 0
      %839 = vmatpush.bf16.msra.mxu0 0
      %840 = vmatpush.bf16.msra.mxu0 0
      %841 = vmatpush.bf16.msra.mxu0 0
      %842 = vmatpush.bf16.msra.mxu0 %v817
      %843 = vmatmul.bf16.gmra.mxu0 %v810
      %v844 = vpop.f32.mrf.mxu0
      %v845 = vadd.f32 0.0, %v844
      %v846 = vpop.f32.mrf.mxu0
      %847 = vdwg.mxu0
      %848 = vmatpush.bf16.msra.mxu0 0
      %849 = vmatpush.bf16.msra.mxu0 0
      %850 = vmatpush.bf16.msra.mxu0 0
      %851 = vmatpush.bf16.msra.mxu0 0
      %852 = vmatpush.bf16.msra.mxu0 0
      %853 = vmatpush.bf16.msra.mxu0 0
      %854 = vmatpush.bf16.msra.mxu0 0
      %855 = vmatpush.bf16.msra.mxu0 %v820
      %856 = vmatmul.bf16.gmra.mxu0 %v810
      %v857 = vpop.f32.mrf.mxu0
      %v858 = vadd.f32 0.0, %v857
      %v859 = vpop.f32.mrf.mxu0
      %860 = vdwg.mxu0
      %v861 = vld [vmem:[%s9] sm:$0xff]
      %863 = vset.pattern.permute.xlu0 0
      %864 = vperm.xlu0 %863, %v861
      %v865 = vpop.permute.xlu0 %864
      %v867 = vmul.f32 %v832, %v865
      %v868 = vmul.f32 %v845, %v865
      %v869 = vmul.f32 %v858, %v865
      %v870 = vld [vmem:[%s10] sm:$0xff]
      %872 = vset.pattern.permute.xlu0 0
      %873 = vperm.xlu0 %872, %v870
      %v874 = vpop.permute.xlu0 %873
      %v876 = vadd.f32 %v867, %v874
      %v877 = vadd.f32 %v868, %v874
      %v878 = vadd.f32 %v869, %v874
      %v879 = vld [vmem:[%s11] sm:$0xf]
      %880 = vst [vmem:[#allocation1] ss:$2 sm:$0xff] %v469
      %s881 = scalar_lea.vmem [#allocation1], 16
      %882 = vst [vmem:[%s881] ss:$2 sm:$0xff] %v470
      %v883 = vld.sshfl [vmem:[#allocation1] sm:$0xff pattern:$0x75316420]
      %v884 = vld.sshfl [vmem:[#allocation1 + $0x8] sm:$0xff pattern:$0x75316420]
      %v885 = vld.sshfl [vmem:[#allocation1 + $0x10] sm:$0xff pattern:$0x75316420]
      %v889 = vpack.c.bf16 %v883, %v883
      %v890 = vpack.c.bf16 %v884, %v884
      %v891 = vpack.c.bf16 %v885, %v885
      %895 = vrot.lane.b32.xlu0 %v889, 109
      %v896 = vpop.permute.xlu0 %895
      %897 = vrot.lane.b32.xlu0 %v890, 109
      %v898 = vpop.permute.xlu0 %897
      %899 = vrot.lane.b32.xlu0 %v891, 109
      %v900 = vpop.permute.xlu0 %899
      %vm901 = vcmask 891904
      %v902 = vsel %vm901, %v896, %v898
      %v903 = vsel %vm901, %v898, %v900
      %v905 = vsel %vm487, %v879, 0
      %v908 = vsel %vm491, %v902, 0
      %v911 = vsel %vm491, %v903, 0
      %v914 = vsel %vm491, %v900, 0
      %916 = vmatpush.bf16.msra.mxu0 0
      %917 = vmatpush.bf16.msra.mxu0 0
      %918 = vmatpush.bf16.msra.mxu0 0
      %919 = vmatpush.bf16.msra.mxu0 0
      %920 = vmatpush.bf16.msra.mxu0 0
      %921 = vmatpush.bf16.msra.mxu0 0
      %922 = vmatpush.bf16.msra.mxu0 0
      %923 = vmatpush.bf16.msra.mxu0 %v908
      %924 = vmatmul.bf16.gmra.mxu0 %v905
      %v925 = vpop.f32.mrf.mxu0
      %v926 = vadd.f32 0.0, %v925
      %v927 = vpop.f32.mrf.mxu0
      %928 = vdwg.mxu0
      %929 = vmatpush.bf16.msra.mxu0 0
      %930 = vmatpush.bf16.msra.mxu0 0
      %931 = vmatpush.bf16.msra.mxu0 0
      %932 = vmatpush.bf16.msra.mxu0 0
      %933 = vmatpush.bf16.msra.mxu0 0
      %934 = vmatpush.bf16.msra.mxu0 0
      %935 = vmatpush.bf16.msra.mxu0 0
      %936 = vmatpush.bf16.msra.mxu0 %v911
      %937 = vmatmul.bf16.gmra.mxu0 %v905
      %v938 = vpop.f32.mrf.mxu0
      %v939 = vadd.f32 0.0, %v938
      %v940 = vpop.f32.mrf.mxu0
      %941 = vdwg.mxu0
      %942 = vmatpush.bf16.msra.mxu0 0
      %943 = vmatpush.bf16.msra.mxu0 0
      %944 = vmatpush.bf16.msra.mxu0 0
      %945 = vmatpush.bf16.msra.mxu0 0
      %946 = vmatpush.bf16.msra.mxu0 0
      %947 = vmatpush.bf16.msra.mxu0 0
      %948 = vmatpush.bf16.msra.mxu0 0
      %949 = vmatpush.bf16.msra.mxu0 %v914
      %950 = vmatmul.bf16.gmra.mxu0 %v905
      %v951 = vpop.f32.mrf.mxu0
      %v952 = vadd.f32 0.0, %v951
      %v953 = vpop.f32.mrf.mxu0
      %954 = vdwg.mxu0
      %v955 = vld [vmem:[%s12] sm:$0xff]
      %957 = vset.pattern.permute.xlu0 0
      %958 = vperm.xlu0 %957, %v955
      %v959 = vpop.permute.xlu0 %958
      %v961 = vmul.f32 %v926, %v959
      %v962 = vmul.f32 %v939, %v959
      %v963 = vmul.f32 %v952, %v959
      %v964 = vld [vmem:[%s13] sm:$0xff]
      %966 = vset.pattern.permute.xlu0 0
      %967 = vperm.xlu0 %966, %v964
      %v968 = vpop.permute.xlu0 %967
      %v970 = vadd.f32 %v961, %v968
      %v971 = vadd.f32 %v962, %v968
      %v972 = vadd.f32 %v963, %v968
      %v973 = vadd.f32 %v876, %v970
      %v974 = vadd.f32 %v877, %v971
      %v975 = vadd.f32 %v878, %v972
      %v976 = vmax.f32 %v973, 0.0
      %v977 = vmax.f32 %v974, 0.0
      %v978 = vmax.f32 %v975, 0.0
      %979 = vst [vmem:[%s467] sm:$0xff] %v976
      %980 = vst [vmem:[%s467 + $0x8] sm:$0xff] %v977
      %vm981 = vcmask 261120
      %982 = vst.msk [vmem:[%s467 + $0x10] sm:$0xff] %vm981, %v978
      %p983 = scmp.lt.s32.totalorder %s25, 1
      %s984 = scalar_select %p983, %s25, 1
      %s985 = smul.addr %s984, 3
      %s986 = smul.addr %s985, 8
      %s987 = scalar_lea.vmem %s14, %s986
      // Predicated region
      $region77: #{block_forward.1} parent=75 // pred_check
        %p988 = pneg %p342
      $region78: #{block_forward.1} parent=75 // pred_check_branch
        %990 = sbr.rel (%p988) target = $region80
      $region79: #{block_forward.1} parent=75 // pred_region
        _
      $region80: #{block_forward.1} parent=75 // pred_fallthru
        _
    $region76: #{block_forward.1} parent=5 // pred_fallthru
      _
    %p991 = scmp.le.s32.totalorder 2, %s20
    // Predicated region
    $region81: #{block_forward.1} parent=5 // pred_check
      %p992 = pneg %p991
    $region82: #{block_forward.1} parent=5 // pred_check_branch
      %994 = sbr.rel (%p992) target = $region84
    $region83: #{block_forward.1} parent=5 // pred_region
      %s995 = ssub.s32 %s20, 2
      // Predicated region
      $region85: #{block_forward.1} parent=83 // pred_check
        %p996 = pneg %p348
      $region86: #{block_forward.1} parent=83 // pred_check_branch
        %998 = sbr.rel (%p996) target = $region88
      $region87: #{block_forward.1} parent=83 // pred_region
        %p999 = scmp.lt.s32.totalorder %s26, 1
        %s1000 = scalar_select %p999, %s26, 1
        %s1001 = smul.addr %s1000, 3
        %s1002 = smul.addr %s1001, 8
        %s1003 = scalar_lea.vmem %s14, %s1002
      $region88: #{block_forward.1} parent=83 // pred_fallthru
        _
    $region84: #{block_forward.1} parent=5 // pred_fallthru
      _
  $region6: #{block_forward.1} parent=0 // loop_footer
    %s24 = sadd.s32 1, %s20
  $region7: #{block_forward.1} parent=0 // loop_footer_branch
    %19 = sbr.rel target = $region3
  $region8: #{block_forward.1} parent=0 // loop_exit
    _

</llo_original>
